<compile_context>
chip_gen: v7x
topology: tpu7x:2x2x1
jax: 0.10.0
libtpu: 0.0.40
codegen_flags: <defaults>
</compile_context>

<pallas_src>
import functools

import jax
import jax.numpy as jnp
from jax.experimental import pallas as pl
from jax.experimental.pallas import tpu as pltpu


def _cdiv(a, b):
    return -(-a // b)


def _sublane(itemsize):
    # sublane packing: f32 -> 8, bf16 -> 16, int8/fp8 -> 32
    return max(8, 32 // int(itemsize))


# ---------------------------------------------------------------------------
# Kernels
# ---------------------------------------------------------------------------
def _aff_fused_kernel(x_ref, r_ref,
                      la1_ref, lb1_ref, la2_ref, lb2_ref,
                      ga1_ref, gb1_ref, ga2_ref, gb2_ref,
                      o_ref, *, hw_inv):
    """Whole AFF for one batch element.

    Refs are (HWp, L) after the Squeezed batch dim, where L = pack*C (128
    lanes when packed).  The packed weights already contain the lane-group
    fold / spread, so the body is identical for packed and unpacked layouts.

    Global branch: AdaptiveAvgPool2d(1) -> conv1x1+BN -> ReLU -> conv1x1+BN.
    Local branch : conv1x1+BN -> ReLU -> conv1x1+BN (per pixel).
    Fusion       : wei = sigmoid(xl + xg); out = 2*(r + (x - r)*wei).
    """
    x = x_ref[...].astype(jnp.float32)                                # (HWp, L)
    r = r_ref[...].astype(jnp.float32)
    xa = x + r

    # ---- global branch (f32 spatial sum; group fold baked into ga1) ----
    s = jnp.sum(xa, axis=0, keepdims=True) * hw_inv                   # (1, L)
    hg = jnp.maximum(
        jnp.dot(s, ga1_ref[...], preferred_element_type=jnp.float32)
        + gb1_ref[...], 0.0)
    xg = (jnp.dot(hg, ga2_ref[...], preferred_element_type=jnp.float32)
          + gb2_ref[...])                                             # (1, L)

    # ---- local branch (block-diagonal packed weights) ----
    hl = jnp.maximum(
        jnp.dot(xa, la1_ref[...], preferred_element_type=jnp.float32)
        + lb1_ref[...], 0.0)                                          # (HWp, p*IC)
    xl = (jnp.dot(hl, la2_ref[...], preferred_element_type=jnp.float32)
          + lb2_ref[...])                                             # (HWp, L)

    wei = jax.nn.sigmoid(xl + xg)                                     # broadcast
    o_ref[...] = (2.0 * (r + (x - r) * wei)).astype(o_ref.dtype)


def _aff_gate_kernel(x_ref, r_ref, xg_ref,
                     la1_ref, lb1_ref, la2_ref, lb2_ref, o_ref):
    """Streaming fallback: local branch + sigmoid gate + fusion on one
    (tile, L) spatial slab; xg (1, L) is precomputed per batch in XLA."""
    x = x_ref[...].astype(jnp.float32)                                # (tile, L)
    r = r_ref[...].astype(jnp.float32)
    xa = x + r
    hl = jnp.maximum(
        jnp.dot(xa, la1_ref[...], preferred_element_type=jnp.float32)
        + lb1_ref[...], 0.0)
    xl = (jnp.dot(hl, la2_ref[...], preferred_element_type=jnp.float32)
          + lb2_ref[...])
    wei = jax.nn.sigmoid(xl + xg_ref[...])                            # (1, L) bcast
    o_ref[...] = (2.0 * (r + (x - r) * wei)).astype(o_ref.dtype)


# ---------------------------------------------------------------------------
# VMEM accounting / tile picking
# ---------------------------------------------------------------------------
def _padded_bytes(rows, cols, itemsize):
    """Bytes of a (rows, cols) array after Mosaic tile padding."""
    sub = _sublane(itemsize)
    return _cdiv(rows, sub) * sub * _cdiv(cols, 128) * 128 * itemsize


def _fused_vmem_bytes(hwp, lanes, act_dtype):
    """Padding-aware per-core VMEM estimate of the fused path."""
    item = jnp.dtype(act_dtype).itemsize
    io_slab = _padded_bytes(hwp, lanes, item)
    f32_slab = _padded_bytes(hwp, max(lanes, 128), 4)
    io = 3 * 2 * io_slab        # x / residual / out, double-buffered pipeline
    inter = 6 * f32_slab        # x, r, xa, hl (lane-padded), xl/wei, x-r (f32)
    weights = 64 * 1024
    return io + inter + weights + (2 << 20)


def _vmem_capacity_bytes():
    try:
        return int(pltpu.get_tpu_info().vmem_capacity_bytes)
    except Exception:
        return 64 << 20         # conservative (v7x per-TensorCore)


def _pick_tile(hwp, max_rows, itemsize):
    """Largest divisor of hwp that is a multiple of the dtype sublane and
    <= max_rows (else full hwp)."""
    sub = _sublane(itemsize)
    t = (min(max_rows, hwp) // sub) * sub
    while t >= sub:
        if hwp % t == 0:
            return t
        t -= sub
    return hwp


# ---------------------------------------------------------------------------
# Lane packing of the folded conv+BN weights (host-side, once per call)
# ---------------------------------------------------------------------------
def _pack_aff_params(params, pack):
    """Fold the pixel packing (pack pixels per 128-lane group) into weights."""
    if pack == 1:
        return dict(params)
    eye = jnp.eye(pack, dtype=jnp.float32)

    def block_diag(a):          # (cin, cout) -> (pack*cin, pack*cout)
        return jnp.kron(eye, a)

    def tile_cols(b):           # (1, k) -> (1, pack*k)
        return jnp.tile(b, (1, pack))

    return dict(
        l_a1=block_diag(params["l_a1"]), l_b1=tile_cols(params["l_b1"]),
        l_a2=block_diag(params["l_a2"]), l_b2=tile_cols(params["l_b2"]),
        # group fold (sum over pack lane groups) baked in vertically:
        g_a1=jnp.tile(params["g_a1"], (pack, 1)), g_b1=params["g_b1"],
        # spread back across groups baked in horizontally:
        g_a2=jnp.tile(params["g_a2"], (1, pack)), g_b2=tile_cols(params["g_b2"]),
    )


# ---------------------------------------------------------------------------
# Wrappers
# ---------------------------------------------------------------------------
def _aff_fused(x, residual, params, hw_inv, vmem_limit):
    N, HWp, L = x.shape
    IC = params["g_a1"].shape[1]
    ICp = params["l_a1"].shape[1]

    act_spec = pl.BlockSpec((pl.Squeezed(), HWp, L), lambda n: (n, 0, 0))

    def wspec(rows, cols):
        return pl.BlockSpec((rows, cols), lambda n: (0, 0))

    return pl.pallas_call(
        functools.partial(_aff_fused_kernel, hw_inv=hw_inv),
        out_shape=jax.ShapeDtypeStruct((N, HWp, L), x.dtype),
        grid_spec=pltpu.PrefetchScalarGridSpec(
            num_scalar_prefetch=0,
            grid=(N,),
            in_specs=[
                act_spec, act_spec,
                wspec(L, ICp), wspec(1, ICp), wspec(ICp, L), wspec(1, L),
                wspec(L, IC), wspec(1, IC), wspec(IC, L), wspec(1, L),
            ],
            out_specs=act_spec,
        ),
        compiler_params=pltpu.CompilerParams(
            # batch axis parallel -> megacore-shards on v7x when N >= 2
            dimension_semantics=("parallel",),
            vmem_limit_bytes=int(vmem_limit),
        ),
    )(x, residual,
      params["l_a1"], params["l_b1"], params["l_a2"], params["l_b2"],
      params["g_a1"], params["g_b1"], params["g_a2"], params["g_b2"])


def _aff_streamed(x, residual, params, hw_inv, p_tile):
    """Fallback for per-batch slabs too big for VMEM: the tiny global branch
    runs in XLA (native-dtype reduce with f32 accumulation + two small
    matmuls); the Pallas kernel streams large lane-dense spatial tiles."""
    N, HWp, L = x.shape
    IC = params["g_a1"].shape[1]
    ICp = params["l_a1"].shape[1]
    item = jnp.dtype(x.dtype).itemsize

    xa_sum = (jnp.sum(x, axis=1, dtype=jnp.float32)
              + jnp.sum(residual, axis=1, dtype=jnp.float32))          # (N, L)
    hg = jnp.maximum((xa_sum * hw_inv) @ params["g_a1"] + params["g_b1"], 0.0)
    xg = (hg @ params["g_a2"] + params["g_b2"])[:, None, :]            # (N, 1, L)

    if p_tile is None:
        # target >= ~1 MiB of payload per input slab per grid step
        p_tile = max(_sublane(item), (1 << 20) // (_cdiv(L, 128) * 128 * item))
    tile = _pick_tile(HWp, p_tile, item)
    n_tiles = HWp // tile

    act_spec = pl.BlockSpec((pl.Squeezed(), tile, L), lambda n, t: (n, t, 0))
    vec_spec = pl.BlockSpec((pl.Squeezed(), 1, L), lambda n, t: (n, 0, 0))

    def wspec(rows, cols):
        return pl.BlockSpec((rows, cols), lambda n, t: (0, 0))

    return pl.pallas_call(
        _aff_gate_kernel,
        out_shape=jax.ShapeDtypeStruct((N, HWp, L), x.dtype),
        grid_spec=pltpu.PrefetchScalarGridSpec(
            num_scalar_prefetch=0,
            grid=(N, n_tiles),
            in_specs=[act_spec, act_spec, vec_spec,
                      wspec(L, ICp), wspec(1, ICp), wspec(ICp, L), wspec(1, L)],
            out_specs=act_spec,
        ),
        compiler_params=pltpu.CompilerParams(
            dimension_semantics=("parallel", "parallel")),
    )(x, residual, xg,
      params["l_a1"], params["l_b1"], params["l_a2"], params["l_b2"])


def aff_forward(x, residual, params, *, p_tile=None, vmem_budget_bytes=None):
    """AFF forward.  x, residual: (N, H*W, C), f32 or bf16 (bf16 halves HBM
    bytes on every TPU generation; all math stays f32 in-register)."""
    assert residual.shape == x.shape
    N, HW, C = x.shape

    # ---- lane packing: pack pixels so the channel axis fills 128 lanes ----
    pack = 1
    if C < 128 and 128 % C == 0:
        p = 128 // C
        if HW % p == 0:
            pack = p
    HWp, L = HW // pack, C * pack
    xp = x.reshape(N, HWp, L)                 # contiguous -> free reshape
    rp = residual.reshape(N, HWp, L)
    pp = _pack_aff_params(params, pack)
    hw_inv = 1.0 / float(HW)

    cap = _vmem_capacity_bytes()
    if vmem_budget_bytes is None:
        vmem_budget_bytes = max(int(0.70 * cap), 32 << 20)

    est = _fused_vmem_bytes(HWp, L, x.dtype)
    if est <= vmem_budget_bytes:
        # Minimal-traffic fused path: 3 HBM activation passes total.
        # NOTE: at N == 1 the single grid step leaves the slab DMA prologue
        # exposed; an emit_pipeline-streamed variant with a resident VMEM
        # scratch would hide it but is not implemented here.
        limit = int(min(max(est, 32 << 20), int(0.95 * cap)))
        out = _aff_fused(xp, rp, pp, hw_inv, limit)
    else:
        # Large feature maps: accept one extra read of x/residual (XLA reduce)
        # and stream big lane-dense tiles through the Pallas gate kernel.
        out = _aff_streamed(xp, rp, pp, hw_inv, p_tile)
    return out.reshape(N, HW, C)


# ---------------------------------------------------------------------------
# Deterministic parameter construction (Conv2d 1x1 + BatchNorm2d folding)
# ---------------------------------------------------------------------------
def init_aff_params(key, channels, r, eps=1e-5):
    ic = channels // r
    keys = iter(jax.random.split(key, 24))

    def conv_bn(cin, cout):
        w = jax.random.normal(next(keys), (cout, cin), jnp.float32) / jnp.sqrt(cin)
        b = 0.1 * jax.random.normal(next(keys), (cout,), jnp.float32)
        gamma = 1.0 + 0.1 * jax.random.normal(next(keys), (cout,), jnp.float32)
        beta = 0.1 * jax.random.normal(next(keys), (cout,), jnp.float32)
        mean = 0.1 * jax.random.normal(next(keys), (cout,), jnp.float32)
        var = jnp.abs(jax.random.normal(next(keys), (cout,), jnp.float32)) + 0.5
        s = gamma / jnp.sqrt(var + eps)
        a = (w * s[:, None]).T                       # (cin, cout)
        bias = (b * s + beta - mean * s)[None, :]    # (1, cout)
        return a, bias

    l_a1, l_b1 = conv_bn(channels, ic)
    l_a2, l_b2 = conv_bn(ic, channels)
    g_a1, g_b1 = conv_bn(channels, ic)
    g_a2, g_b2 = conv_bn(ic, channels)
    return dict(l_a1=l_a1, l_b1=l_b1, l_a2=l_a2, l_b2=l_b2,
                g_a1=g_a1, g_b1=g_b1, g_a2=g_a2, g_b2=g_b2)


def aff_reference(x, residual, params):
    """Pure-JAX reference of the same (folded) forward pass."""
    x = x.astype(jnp.float32)
    residual = residual.astype(jnp.float32)
    xa = x + residual
    h = jnp.maximum(xa @ params["l_a1"] + params["l_b1"], 0.0)
    xl = h @ params["l_a2"] + params["l_b2"]
    mean = jnp.mean(xa, axis=1, keepdims=True)
    hg = jnp.maximum(mean @ params["g_a1"] + params["g_b1"], 0.0)
    xg = hg @ params["g_a2"] + params["g_b2"]
    wei = jax.nn.sigmoid(xl + xg)
    return 2.0 * x * wei + 2.0 * residual * (1.0 - wei)


# ---------------------------------------------------------------------------
if __name__ == "__main__":
    # AFF(channels=32, r=8) on NCHW (2, 32, 16, 16) -> channels-last (N, HW, C)
    N, C, H, W = 2, 32, 16, 16
    R = 8
    HW = H * W

    key = jax.random.PRNGKey(0)
    kx, kr, kp = jax.random.split(key, 3)
    x = jax.random.normal(kx, (N, HW, C), jnp.float32)
    residual = jax.random.normal(kr, (N, HW, C), jnp.float32)
    params = init_aff_params(kp, channels=C, r=R)

    ref = aff_reference(x, residual, params)

    # 1) fused minimal-traffic path, f32 activations (lane-packed: 4 px / row)
    out = jax.block_until_ready(aff_forward(x, residual, params))
    assert out.shape == (N, HW, C) and out.dtype == x.dtype
    assert jnp.allclose(out, ref, rtol=1e-5, atol=1e-5), (
        float(jnp.max(jnp.abs(out - ref))))

    # 2) fused path with bf16 activations (halved HBM bytes on all gens);
    #    compute stays f32 in-register.
    out_bf16 = jax.block_until_ready(
        aff_forward(x.astype(jnp.bfloat16), residual.astype(jnp.bfloat16),
                    params))
    assert out_bf16.dtype == jnp.bfloat16
    assert jnp.allclose(out_bf16.astype(jnp.float32), ref, rtol=5e-2, atol=1e-1)

    # 3) streaming fallback path (forced by a zero VMEM budget), multi-tile grid
    out_s = jax.block_until_ready(
        aff_forward(x, residual, params, p_tile=16, vmem_budget_bytes=0))
    assert jnp.allclose(out_s, ref, rtol=1e-5, atol=1e-5), (
        float(jnp.max(jnp.abs(out_s - ref))))

    # 4) channel count that cannot lane-pack (48 does not divide 128): pack=1
    C2 = 48
    x2 = jax.random.normal(jax.random.PRNGKey(1), (1, 64, C2), jnp.float32)
    r2 = jax.random.normal(jax.random.PRNGKey(2), (1, 64, C2), jnp.float32)
    params2 = init_aff_params(jax.random.PRNGKey(3), channels=C2, r=R)
    ref2 = aff_reference(x2, r2, params2)
    out2 = jax.block_until_ready(aff_forward(x2, r2, params2))
    assert jnp.allclose(out2, ref2, rtol=1e-5, atol=1e-5), (
        float(jnp.max(jnp.abs(out2 - ref2))))

    print("KERNEL_OK")
</pallas_src>

<mosaic_0001>
module attributes {stable_mosaic.version = 11 : i64} {
  func.func @_aff_fused_kernel(%arg0: i32, %arg1: memref<1x64x128xf32, #tpu.memory_space<vmem>>, %arg2: memref<1x64x128xf32, #tpu.memory_space<vmem>>, %arg3: memref<128x16xf32, #tpu.memory_space<vmem>>, %arg4: memref<1x16xf32, #tpu.memory_space<vmem>>, %arg5: memref<16x128xf32, #tpu.memory_space<vmem>>, %arg6: memref<1x128xf32, #tpu.memory_space<vmem>>, %arg7: memref<128x4xf32, #tpu.memory_space<vmem>>, %arg8: memref<1x4xf32, #tpu.memory_space<vmem>>, %arg9: memref<4x128xf32, #tpu.memory_space<vmem>>, %arg10: memref<1x128xf32, #tpu.memory_space<vmem>>, %arg11: memref<1x64x128xf32, #tpu.memory_space<vmem>>) attributes {dimension_semantics = [#tpu.dimension_semantics<parallel>], iteration_bounds = array<i64: 2>, scalar_prefetch = 0 : i64, scratch_operands = 0 : i64, tpu.core_type = #tpu.core_type<tc>, window_params = [{transform_indices = @transform_0, window_bounds = array<i64: 1, 64, 128>}, {transform_indices = @transform_1, window_bounds = array<i64: 1, 64, 128>}, {pipeline_mode = #tpu.pipeline_mode<synchronous>, transform_indices = @transform_2, window_bounds = array<i64: 128, 16>}, {pipeline_mode = #tpu.pipeline_mode<synchronous>, transform_indices = @transform_3, window_bounds = array<i64: 1, 16>}, {pipeline_mode = #tpu.pipeline_mode<synchronous>, transform_indices = @transform_4, window_bounds = array<i64: 16, 128>}, {pipeline_mode = #tpu.pipeline_mode<synchronous>, transform_indices = @transform_5, window_bounds = array<i64: 1, 128>}, {pipeline_mode = #tpu.pipeline_mode<synchronous>, transform_indices = @transform_6, window_bounds = array<i64: 128, 4>}, {pipeline_mode = #tpu.pipeline_mode<synchronous>, transform_indices = @transform_7, window_bounds = array<i64: 1, 4>}, {pipeline_mode = #tpu.pipeline_mode<synchronous>, transform_indices = @transform_8, window_bounds = array<i64: 4, 128>}, {pipeline_mode = #tpu.pipeline_mode<synchronous>, transform_indices = @transform_9, window_bounds = array<i64: 1, 128>}, {transform_indices = @transform_10, window_bounds = array<i64: 1, 64, 128>}]} {
    %c0 = arith.constant 0 : index
    %c0_0 = arith.constant 0 : index
    %c0_1 = arith.constant 0 : index
    %0 = vector.load %arg1[%c0, %c0_0, %c0_1] : memref<1x64x128xf32, #tpu.memory_space<vmem>>, vector<1x64x128xf32>
    %1 = vector.shape_cast %0 : vector<1x64x128xf32> to vector<64x128xf32>
    %c0_2 = arith.constant 0 : index
    %c0_3 = arith.constant 0 : index
    %c0_4 = arith.constant 0 : index
    %2 = vector.load %arg2[%c0_2, %c0_3, %c0_4] : memref<1x64x128xf32, #tpu.memory_space<vmem>>, vector<1x64x128xf32>
    %3 = vector.shape_cast %2 : vector<1x64x128xf32> to vector<64x128xf32>
    %4 = arith.addf %1, %3 : vector<64x128xf32>
    %cst = arith.constant dense<0.000000e+00> : vector<128xf32>
    %5 = vector.multi_reduction <add>, %4, %cst [0] : vector<64x128xf32> to vector<128xf32>
    %6 = vector.shape_cast %5 : vector<128xf32> to vector<1x128xf32>
    %cst_5 = arith.constant 3.906250e-03 : f32
    %7 = vector.broadcast %cst_5 : f32 to vector<1x128xf32>
    %8 = arith.mulf %6, %7 : vector<1x128xf32>
    %c0_6 = arith.constant 0 : index
    %c0_7 = arith.constant 0 : index
    %9 = vector.load %arg7[%c0_6, %c0_7] : memref<128x4xf32, #tpu.memory_space<vmem>>, vector<128x4xf32>
    %cst_8 = arith.constant dense<0.000000e+00> : vector<1x4xf32>
    %10 = tpu.matmul %8, %9, %cst_8 {dimension_numbers = #tpu.dot_dimension_numbers<[1], [0], [0], [1], [0, 0, 1, 1], [], []>} : vector<1x128xf32>, vector<128x4xf32>, vector<1x4xf32> -> vector<1x4xf32>
    %c0_9 = arith.constant 0 : index
    %c0_10 = arith.constant 0 : index
    %11 = vector.load %arg8[%c0_9, %c0_10] : memref<1x4xf32, #tpu.memory_space<vmem>>, vector<1x4xf32>
    %12 = arith.addf %10, %11 : vector<1x4xf32>
    %cst_11 = arith.constant 0.000000e+00 : f32
    %13 = vector.broadcast %cst_11 : f32 to vector<1x4xf32>
    %14 = arith.maximumf %12, %13 : vector<1x4xf32>
    %c0_12 = arith.constant 0 : index
    %c0_13 = arith.constant 0 : index
    %15 = vector.load %arg9[%c0_12, %c0_13] : memref<4x128xf32, #tpu.memory_space<vmem>>, vector<4x128xf32>
    %cst_14 = arith.constant dense<0.000000e+00> : vector<1x128xf32>
    %16 = tpu.matmul %14, %15, %cst_14 {dimension_numbers = #tpu.dot_dimension_numbers<[1], [0], [0], [1], [0, 0, 1, 1], [], []>} : vector<1x4xf32>, vector<4x128xf32>, vector<1x128xf32> -> vector<1x128xf32>
    %c0_15 = arith.constant 0 : index
    %c0_16 = arith.constant 0 : index
    %17 = vector.load %arg10[%c0_15, %c0_16] : memref<1x128xf32, #tpu.memory_space<vmem>>, vector<1x128xf32>
    %18 = arith.addf %16, %17 : vector<1x128xf32>
    %c0_17 = arith.constant 0 : index
    %c0_18 = arith.constant 0 : index
    %19 = vector.load %arg3[%c0_17, %c0_18] : memref<128x16xf32, #tpu.memory_space<vmem>>, vector<128x16xf32>
    %cst_19 = arith.constant dense<0.000000e+00> : vector<64x16xf32>
    %20 = tpu.matmul %4, %19, %cst_19 {dimension_numbers = #tpu.dot_dimension_numbers<[1], [0], [0], [1], [0, 0, 1, 1], [], []>} : vector<64x128xf32>, vector<128x16xf32>, vector<64x16xf32> -> vector<64x16xf32>
    %c0_20 = arith.constant 0 : index
    %c0_21 = arith.constant 0 : index
    %21 = vector.load %arg4[%c0_20, %c0_21] : memref<1x16xf32, #tpu.memory_space<vmem>>, vector<1x16xf32>
    %22 = vector.broadcast %21 : vector<1x16xf32> to vector<64x16xf32>
    %23 = arith.addf %20, %22 : vector<64x16xf32>
    %cst_22 = arith.constant 0.000000e+00 : f32
    %24 = vector.broadcast %cst_22 : f32 to vector<64x16xf32>
    %25 = arith.maximumf %23, %24 : vector<64x16xf32>
    %c0_23 = arith.constant 0 : index
    %c0_24 = arith.constant 0 : index
    %26 = vector.load %arg5[%c0_23, %c0_24] : memref<16x128xf32, #tpu.memory_space<vmem>>, vector<16x128xf32>
    %cst_25 = arith.constant dense<0.000000e+00> : vector<64x128xf32>
    %27 = tpu.matmul %25, %26, %cst_25 {dimension_numbers = #tpu.dot_dimension_numbers<[1], [0], [0], [1], [0, 0, 1, 1], [], []>} : vector<64x16xf32>, vector<16x128xf32>, vector<64x128xf32> -> vector<64x128xf32>
    %c0_26 = arith.constant 0 : index
    %c0_27 = arith.constant 0 : index
    %28 = vector.load %arg6[%c0_26, %c0_27] : memref<1x128xf32, #tpu.memory_space<vmem>>, vector<1x128xf32>
    %29 = vector.broadcast %28 : vector<1x128xf32> to vector<64x128xf32>
    %30 = arith.addf %27, %29 : vector<64x128xf32>
    %31 = vector.broadcast %18 : vector<1x128xf32> to vector<64x128xf32>
    %32 = arith.addf %30, %31 : vector<64x128xf32>
    %33 = arith.negf %32 : vector<64x128xf32>
    %34 = math.exp %33 : vector<64x128xf32>
    %cst_28 = arith.constant 1.000000e+00 : f32
    %35 = vector.broadcast %cst_28 : f32 to vector<64x128xf32>
    %36 = arith.addf %35, %34 : vector<64x128xf32>
    %37 = arith.divf %35, %36 : vector<64x128xf32>
    %38 = arith.subf %1, %3 : vector<64x128xf32>
    %39 = arith.mulf %38, %37 : vector<64x128xf32>
    %40 = arith.addf %3, %39 : vector<64x128xf32>
    %cst_29 = arith.constant 2.000000e+00 : f32
    %41 = vector.broadcast %cst_29 : f32 to vector<64x128xf32>
    %42 = arith.mulf %41, %40 : vector<64x128xf32>
    %c0_30 = arith.constant 0 : index
    %c0_31 = arith.constant 0 : index
    %c0_32 = arith.constant 0 : index
    %43 = vector.load %arg11[%c0_30, %c0_31, %c0_32] : memref<1x64x128xf32, #tpu.memory_space<vmem>>, vector<1x64x128xf32>
    %44 = vector.shape_cast %43 : vector<1x64x128xf32> to vector<64x128xf32>
    %45 = vector.shape_cast %42 : vector<64x128xf32> to vector<1x64x128xf32>
    tpu.vector_store %arg11[%c0_30, %c0_31, %c0_32], %45 {strides = array<i32>} : memref<1x64x128xf32, #tpu.memory_space<vmem>>, vector<1x64x128xf32>,
    return
  }
  func.func @transform_0(%arg0: i32) -> (i32, i32, i32) {
    %c0_i32 = arith.constant 0 : i32
    %c0_i32_0 = arith.constant 0 : i32
    %c0_i32_1 = arith.constant 0 : i32
    return %arg0, %c0_i32, %c0_i32_0 : i32, i32, i32
  }
  func.func @transform_1(%arg0: i32) -> (i32, i32, i32) {
    %c0_i32 = arith.constant 0 : i32
    %c0_i32_0 = arith.constant 0 : i32
    %c0_i32_1 = arith.constant 0 : i32
    return %arg0, %c0_i32, %c0_i32_0 : i32, i32, i32
  }
  func.func @transform_2(%arg0: i32) -> (i32, i32) {
    %c0_i32 = arith.constant 0 : i32
    %c0_i32_0 = arith.constant 0 : i32
    %c0_i32_1 = arith.constant 0 : i32
    return %c0_i32, %c0_i32_0 : i32, i32
  }
  func.func @transform_3(%arg0: i32) -> (i32, i32) {
    %c0_i32 = arith.constant 0 : i32
    %c0_i32_0 = arith.constant 0 : i32
    %c0_i32_1 = arith.constant 0 : i32
    return %c0_i32, %c0_i32_0 : i32, i32
  }
  func.func @transform_4(%arg0: i32) -> (i32, i32) {
    %c0_i32 = arith.constant 0 : i32
    %c0_i32_0 = arith.constant 0 : i32
    %c0_i32_1 = arith.constant 0 : i32
    return %c0_i32, %c0_i32_0 : i32, i32
  }
  func.func @transform_5(%arg0: i32) -> (i32, i32) {
    %c0_i32 = arith.constant 0 : i32
    %c0_i32_0 = arith.constant 0 : i32
    %c0_i32_1 = arith.constant 0 : i32
    return %c0_i32, %c0_i32_0 : i32, i32
  }
  func.func @transform_6(%arg0: i32) -> (i32, i32) {
    %c0_i32 = arith.constant 0 : i32
    %c0_i32_0 = arith.constant 0 : i32
    %c0_i32_1 = arith.constant 0 : i32
    return %c0_i32, %c0_i32_0 : i32, i32
  }
  func.func @transform_7(%arg0: i32) -> (i32, i32) {
    %c0_i32 = arith.constant 0 : i32
    %c0_i32_0 = arith.constant 0 : i32
    %c0_i32_1 = arith.constant 0 : i32
    return %c0_i32, %c0_i32_0 : i32, i32
  }
  func.func @transform_8(%arg0: i32) -> (i32, i32) {
    %c0_i32 = arith.constant 0 : i32
    %c0_i32_0 = arith.constant 0 : i32
    %c0_i32_1 = arith.constant 0 : i32
    return %c0_i32, %c0_i32_0 : i32, i32
  }
  func.func @transform_9(%arg0: i32) -> (i32, i32) {
    %c0_i32 = arith.constant 0 : i32
    %c0_i32_0 = arith.constant 0 : i32
    %c0_i32_1 = arith.constant 0 : i32
    return %c0_i32, %c0_i32_0 : i32, i32
  }
  func.func @transform_10(%arg0: i32) -> (i32, i32, i32) {
    %c0_i32 = arith.constant 0 : i32
    %c0_i32_0 = arith.constant 0 : i32
    %c0_i32_1 = arith.constant 0 : i32
    return %arg0, %c0_i32, %c0_i32_0 : i32, i32, i32
  }
}

</mosaic_0001>

<llo_original>
// kernel: tpu_custom_call.1
$region0: #{tpu_custom_call.1}
  #allocation0 [shape = 'u32[]', space=smem, size = 0x4, offset = 0x4, fixed_abs, tag = 'smem constant byte address 0x4 - core index']
  #allocation1 [shape = 'u32[144,128]{1,0:T(1,128)}', space=vmem, size = 0x12000, scoped, tag = 'internal scratch']
  %s0 = inlined_call_operand.vmem [shape: f32[2,64,128], index: 0, kind: input, shape index: {}]
  %s1 = inlined_call_operand.vmem [shape: f32[2,64,128], index: 1, kind: input, shape index: {}]
  %s2 = inlined_call_operand.vmem [shape: f32[128,16], index: 2, kind: input, shape index: {}]
  %s3 = inlined_call_operand.vmem [shape: f32[1,16], index: 3, kind: input, shape index: {}]
  %s4 = inlined_call_operand.vmem [shape: f32[16,128], index: 4, kind: input, shape index: {}]
  %s5 = inlined_call_operand.vmem [shape: f32[1,128], index: 5, kind: input, shape index: {}]
  %s6 = inlined_call_operand.vmem [shape: f32[128,4], index: 6, kind: input, shape index: {}]
  %s7 = inlined_call_operand.vmem [shape: f32[1,4], index: 7, kind: input, shape index: {}]
  %s8 = inlined_call_operand.vmem [shape: f32[4,128], index: 8, kind: input, shape index: {}]
  %s9 = inlined_call_operand.vmem [shape: f32[1,128], index: 9, kind: input, shape index: {}]
  %s10 = inlined_call_operand.hbm [shape: f32[2,64,128], index: 10, kind: output, shape index: {}]
  %s11 = sld [smem:[#allocation0]]
  $region73: #{tpu_custom_call.1} parent=0
    _
  %s13 = ssub.s32 1, %s11
  %s14 = scalar_select 0, %s13, %s11
  $region1: #{tpu_custom_call.1} parent=0
    #allocation2 [shape = 'u8[65536]{0}', space=vmem, size = 0x10000, scoped, tag = 'output window, operand 0']
    #allocation3 [shape = 's32[2]{0}', space=sflag, size = 0x8, scoped, tag = 'scoped memory for tpu_custom_call.1']
    %15 = vsyncpa [#allocation3], 0
    %s16 = scalar_lea.sflag [#allocation3], 1
    %17 = vsyncpa %s16, 0
    loop: start=0, step=1, limit=4
    $region2: #{tpu_custom_call.1} parent=1 // loop_pre_header
      _
    $region3: #{tpu_custom_call.1} parent=1 // loop_header
      %s19 = sphi 0, %s23
      %p20 = scmp.ge.s32.totalorder %s19, 4
      %s29 = sphi 0, %s31
      %s32 = sphi 0, %s29
      %s33 = sphi 0, %s32
      %s49 = sphi 0, %s33
      %s55 = sphi 0, %s57
      %s58 = sphi 0, %s55
      %s59 = sphi 0, %s58
      %s75 = sphi 0, %s59
      %s79 = sphi 0, %s79
      %s81 = sphi 0, %s79
      %s82 = sphi 0, %s81
      %s96 = sphi 0, %s82
      %s100 = sphi 0, %s100
      %s102 = sphi 0, %s100
      %s103 = sphi 0, %s102
      %s117 = sphi 0, %s103
      %s121 = sphi 0, %s121
      %s123 = sphi 0, %s121
      %s124 = sphi 0, %s123
      %s138 = sphi 0, %s124
      %s142 = sphi 0, %s142
      %s144 = sphi 0, %s142
      %s145 = sphi 0, %s144
      %s159 = sphi 0, %s145
      %s163 = sphi 0, %s163
      %s165 = sphi 0, %s163
      %s166 = sphi 0, %s165
      %s180 = sphi 0, %s166
      %s184 = sphi 0, %s184
      %s186 = sphi 0, %s184
      %s187 = sphi 0, %s186
      %s201 = sphi 0, %s187
      %s205 = sphi 0, %s205
      %s207 = sphi 0, %s205
      %s208 = sphi 0, %s207
      %s222 = sphi 0, %s208
      %s226 = sphi 0, %s226
      %s228 = sphi 0, %s226
      %s229 = sphi 0, %s228
      %s243 = sphi 0, %s229
      %s249 = sphi 0, %s251
      %s252 = sphi 0, %s249
      %s253 = sphi 0, %s252
      %s269 = sphi 0, %s253
    $region4: #{tpu_custom_call.1} parent=1 // loop_header_branch
      %22 = sbr.rel (%p20) target = $region8
    $region5: #{tpu_custom_call.1} parent=1 // loop_body
      %s24 = ssub.s32 %s19, 1
      %s25 = ssub.s32 %s19, 2
      %s26 = sadd.s32 %s19, 1
      %s27 = ssub.s32 %s19, %s26
      %p28 = scmp.eq.s32.totalorder %s27, 0
      %s30 = sadd.s32 %s29, 1
      %s31 = scalar_select %p28, %s29, %s30
      %p34 = pneg %p28
      %p35 = scmp.eq.s32.totalorder %s19, 1
      %p36 = por %p34, %p35
      %p37 = scmp.ne.s32.totalorder %s29, %s32
      %p38 = scmp.eq.s32.totalorder %s19, 0
      %p39 = por %p37, %p38
      %p40 = scmp.ne.s32.totalorder %s29, %s32
      %p41 = scmp.eq.s32.totalorder %s24, 1
      %p42 = por %p40, %p41
      %p43 = scmp.ne.s32.totalorder %s32, %s33
      %p44 = scmp.eq.s32.totalorder %s24, 0
      %p45 = por %p43, %p44
      %p46 = scmp.ne.s32.totalorder %s32, %s33
      %p47 = scmp.eq.s32.totalorder %s25, 1
      %p48 = por %p46, %p47
      %p50 = scmp.ne.s32.totalorder %s33, %s49
      %p51 = scmp.eq.s32.totalorder %s25, 0
      %p52 = por %p50, %p51
      %s53 = ssub.s32 %s19, %s26
      %p54 = scmp.eq.s32.totalorder %s53, 0
      %s56 = sadd.s32 %s55, 1
      %s57 = scalar_select %p54, %s55, %s56
      %p60 = pneg %p54
      %p61 = scmp.eq.s32.totalorder %s19, 1
      %p62 = por %p60, %p61
      %p63 = scmp.ne.s32.totalorder %s55, %s58
      %p64 = scmp.eq.s32.totalorder %s19, 0
      %p65 = por %p63, %p64
      %p66 = scmp.ne.s32.totalorder %s55, %s58
      %p67 = scmp.eq.s32.totalorder %s24, 1
      %p68 = por %p66, %p67
      %p69 = scmp.ne.s32.totalorder %s58, %s59
      %p70 = scmp.eq.s32.totalorder %s24, 0
      %p71 = por %p69, %p70
      %p72 = scmp.ne.s32.totalorder %s58, %s59
      %p73 = scmp.eq.s32.totalorder %s25, 1
      %p74 = por %p72, %p73
      %p76 = scmp.ne.s32.totalorder %s59, %s75
      %p77 = scmp.eq.s32.totalorder %s25, 0
      %p78 = por %p76, %p77
      %s80 = sadd.s32 %s79, 1
      %p83 = scmp.eq.s32.totalorder %s19, 1
      %p84 = scmp.ne.s32.totalorder %s79, %s81
      %p85 = scmp.eq.s32.totalorder %s19, 0
      %p86 = por %p84, %p85
      %p87 = scmp.ne.s32.totalorder %s79, %s81
      %p88 = scmp.eq.s32.totalorder %s24, 1
      %p89 = por %p87, %p88
      %p90 = scmp.ne.s32.totalorder %s81, %s82
      %p91 = scmp.eq.s32.totalorder %s24, 0
      %p92 = por %p90, %p91
      %p93 = scmp.ne.s32.totalorder %s81, %s82
      %p94 = scmp.eq.s32.totalorder %s25, 1
      %p95 = por %p93, %p94
      %p97 = scmp.ne.s32.totalorder %s82, %s96
      %p98 = scmp.eq.s32.totalorder %s25, 0
      %p99 = por %p97, %p98
      %s101 = sadd.s32 %s100, 1
      %p104 = scmp.eq.s32.totalorder %s19, 1
      %p105 = scmp.ne.s32.totalorder %s100, %s102
      %p106 = scmp.eq.s32.totalorder %s19, 0
      %p107 = por %p105, %p106
      %p108 = scmp.ne.s32.totalorder %s100, %s102
      %p109 = scmp.eq.s32.totalorder %s24, 1
      %p110 = por %p108, %p109
      %p111 = scmp.ne.s32.totalorder %s102, %s103
      %p112 = scmp.eq.s32.totalorder %s24, 0
      %p113 = por %p111, %p112
      %p114 = scmp.ne.s32.totalorder %s102, %s103
      %p115 = scmp.eq.s32.totalorder %s25, 1
      %p116 = por %p114, %p115
      %p118 = scmp.ne.s32.totalorder %s103, %s117
      %p119 = scmp.eq.s32.totalorder %s25, 0
      %p120 = por %p118, %p119
      %s122 = sadd.s32 %s121, 1
      %p125 = scmp.eq.s32.totalorder %s19, 1
      %p126 = scmp.ne.s32.totalorder %s121, %s123
      %p127 = scmp.eq.s32.totalorder %s19, 0
      %p128 = por %p126, %p127
      %p129 = scmp.ne.s32.totalorder %s121, %s123
      %p130 = scmp.eq.s32.totalorder %s24, 1
      %p131 = por %p129, %p130
      %p132 = scmp.ne.s32.totalorder %s123, %s124
      %p133 = scmp.eq.s32.totalorder %s24, 0
      %p134 = por %p132, %p133
      %p135 = scmp.ne.s32.totalorder %s123, %s124
      %p136 = scmp.eq.s32.totalorder %s25, 1
      %p137 = por %p135, %p136
      %p139 = scmp.ne.s32.totalorder %s124, %s138
      %p140 = scmp.eq.s32.totalorder %s25, 0
      %p141 = por %p139, %p140
      %s143 = sadd.s32 %s142, 1
      %p146 = scmp.eq.s32.totalorder %s19, 1
      %p147 = scmp.ne.s32.totalorder %s142, %s144
      %p148 = scmp.eq.s32.totalorder %s19, 0
      %p149 = por %p147, %p148
      %p150 = scmp.ne.s32.totalorder %s142, %s144
      %p151 = scmp.eq.s32.totalorder %s24, 1
      %p152 = por %p150, %p151
      %p153 = scmp.ne.s32.totalorder %s144, %s145
      %p154 = scmp.eq.s32.totalorder %s24, 0
      %p155 = por %p153, %p154
      %p156 = scmp.ne.s32.totalorder %s144, %s145
      %p157 = scmp.eq.s32.totalorder %s25, 1
      %p158 = por %p156, %p157
      %p160 = scmp.ne.s32.totalorder %s145, %s159
      %p161 = scmp.eq.s32.totalorder %s25, 0
      %p162 = por %p160, %p161
      %s164 = sadd.s32 %s163, 1
      %p167 = scmp.eq.s32.totalorder %s19, 1
      %p168 = scmp.ne.s32.totalorder %s163, %s165
      %p169 = scmp.eq.s32.totalorder %s19, 0
      %p170 = por %p168, %p169
      %p171 = scmp.ne.s32.totalorder %s163, %s165
      %p172 = scmp.eq.s32.totalorder %s24, 1
      %p173 = por %p171, %p172
      %p174 = scmp.ne.s32.totalorder %s165, %s166
      %p175 = scmp.eq.s32.totalorder %s24, 0
      %p176 = por %p174, %p175
      %p177 = scmp.ne.s32.totalorder %s165, %s166
      %p178 = scmp.eq.s32.totalorder %s25, 1
      %p179 = por %p177, %p178
      %p181 = scmp.ne.s32.totalorder %s166, %s180
      %p182 = scmp.eq.s32.totalorder %s25, 0
      %p183 = por %p181, %p182
      %s185 = sadd.s32 %s184, 1
      %p188 = scmp.eq.s32.totalorder %s19, 1
      %p189 = scmp.ne.s32.totalorder %s184, %s186
      %p190 = scmp.eq.s32.totalorder %s19, 0
      %p191 = por %p189, %p190
      %p192 = scmp.ne.s32.totalorder %s184, %s186
      %p193 = scmp.eq.s32.totalorder %s24, 1
      %p194 = por %p192, %p193
      %p195 = scmp.ne.s32.totalorder %s186, %s187
      %p196 = scmp.eq.s32.totalorder %s24, 0
      %p197 = por %p195, %p196
      %p198 = scmp.ne.s32.totalorder %s186, %s187
      %p199 = scmp.eq.s32.totalorder %s25, 1
      %p200 = por %p198, %p199
      %p202 = scmp.ne.s32.totalorder %s187, %s201
      %p203 = scmp.eq.s32.totalorder %s25, 0
      %p204 = por %p202, %p203
      %s206 = sadd.s32 %s205, 1
      %p209 = scmp.eq.s32.totalorder %s19, 1
      %p210 = scmp.ne.s32.totalorder %s205, %s207
      %p211 = scmp.eq.s32.totalorder %s19, 0
      %p212 = por %p210, %p211
      %p213 = scmp.ne.s32.totalorder %s205, %s207
      %p214 = scmp.eq.s32.totalorder %s24, 1
      %p215 = por %p213, %p214
      %p216 = scmp.ne.s32.totalorder %s207, %s208
      %p217 = scmp.eq.s32.totalorder %s24, 0
      %p218 = por %p216, %p217
      %p219 = scmp.ne.s32.totalorder %s207, %s208
      %p220 = scmp.eq.s32.totalorder %s25, 1
      %p221 = por %p219, %p220
      %p223 = scmp.ne.s32.totalorder %s208, %s222
      %p224 = scmp.eq.s32.totalorder %s25, 0
      %p225 = por %p223, %p224
      %s227 = sadd.s32 %s226, 1
      %p230 = scmp.eq.s32.totalorder %s19, 1
      %p231 = scmp.ne.s32.totalorder %s226, %s228
      %p232 = scmp.eq.s32.totalorder %s19, 0
      %p233 = por %p231, %p232
      %p234 = scmp.ne.s32.totalorder %s226, %s228
      %p235 = scmp.eq.s32.totalorder %s24, 1
      %p236 = por %p234, %p235
      %p237 = scmp.ne.s32.totalorder %s228, %s229
      %p238 = scmp.eq.s32.totalorder %s24, 0
      %p239 = por %p237, %p238
      %p240 = scmp.ne.s32.totalorder %s228, %s229
      %p241 = scmp.eq.s32.totalorder %s25, 1
      %p242 = por %p240, %p241
      %p244 = scmp.ne.s32.totalorder %s229, %s243
      %p245 = scmp.eq.s32.totalorder %s25, 0
      %p246 = por %p244, %p245
      %s247 = ssub.s32 %s19, %s26
      %p248 = scmp.eq.s32.totalorder %s247, 0
      %s250 = sadd.s32 %s249, 1
      %s251 = scalar_select %p248, %s249, %s250
      %p254 = pneg %p248
      %p255 = scmp.eq.s32.totalorder %s19, 1
      %p256 = por %p254, %p255
      %p257 = scmp.ne.s32.totalorder %s249, %s252
      %p258 = scmp.eq.s32.totalorder %s19, 0
      %p259 = por %p257, %p258
      %p260 = scmp.ne.s32.totalorder %s249, %s252
      %p261 = scmp.eq.s32.totalorder %s24, 1
      %p262 = por %p260, %p261
      %p263 = scmp.ne.s32.totalorder %s252, %s253
      %p264 = scmp.eq.s32.totalorder %s24, 0
      %p265 = por %p263, %p264
      %p266 = scmp.ne.s32.totalorder %s252, %s253
      %p267 = scmp.eq.s32.totalorder %s25, 1
      %p268 = por %p266, %p267
      %p270 = scmp.ne.s32.totalorder %s253, %s269
      %p271 = scmp.eq.s32.totalorder %s25, 0
      %p272 = por %p270, %p271
      %p273 = scmp.le.s32.totalorder 1, %s19
      %p274 = scmp.lt.s32.totalorder %s19, 3
      %p275 = pnand %p273, %p274
      %p276 = pneg %p275
      // Predicated region
      $region9: #{tpu_custom_call.1} parent=5 // pred_check
        _
      $region10: #{tpu_custom_call.1} parent=5 // pred_check_branch
        %278 = sbr.rel (%p275) target = $region12
      $region11: #{tpu_custom_call.1} parent=5 // pred_region
        %s279 = ssub.s32 %s19, 1
        // Predicated region
        $region13: #{tpu_custom_call.1} parent=11 // pred_check
          %p280 = pneg %p92
        $region14: #{tpu_custom_call.1} parent=11 // pred_check_branch
          %282 = sbr.rel (%p280) target = $region16
        $region15: #{tpu_custom_call.1} parent=11 // pred_region
          _
        $region16: #{tpu_custom_call.1} parent=11 // pred_fallthru
          _
        // Predicated region
        $region17: #{tpu_custom_call.1} parent=11 // pred_check
          %p283 = pneg %p113
        $region18: #{tpu_custom_call.1} parent=11 // pred_check_branch
          %285 = sbr.rel (%p283) target = $region20
        $region19: #{tpu_custom_call.1} parent=11 // pred_region
          _
        $region20: #{tpu_custom_call.1} parent=11 // pred_fallthru
          _
        // Predicated region
        $region21: #{tpu_custom_call.1} parent=11 // pred_check
          %p286 = pneg %p134
        $region22: #{tpu_custom_call.1} parent=11 // pred_check_branch
          %288 = sbr.rel (%p286) target = $region24
        $region23: #{tpu_custom_call.1} parent=11 // pred_region
          _
        $region24: #{tpu_custom_call.1} parent=11 // pred_fallthru
          _
        // Predicated region
        $region25: #{tpu_custom_call.1} parent=11 // pred_check
          %p289 = pneg %p155
        $region26: #{tpu_custom_call.1} parent=11 // pred_check_branch
          %291 = sbr.rel (%p289) target = $region28
        $region27: #{tpu_custom_call.1} parent=11 // pred_region
          _
        $region28: #{tpu_custom_call.1} parent=11 // pred_fallthru
          _
        // Predicated region
        $region29: #{tpu_custom_call.1} parent=11 // pred_check
          %p292 = pneg %p176
        $region30: #{tpu_custom_call.1} parent=11 // pred_check_branch
          %294 = sbr.rel (%p292) target = $region32
        $region31: #{tpu_custom_call.1} parent=11 // pred_region
          _
        $region32: #{tpu_custom_call.1} parent=11 // pred_fallthru
          _
        // Predicated region
        $region33: #{tpu_custom_call.1} parent=11 // pred_check
          %p295 = pneg %p197
        $region34: #{tpu_custom_call.1} parent=11 // pred_check_branch
          %297 = sbr.rel (%p295) target = $region36
        $region35: #{tpu_custom_call.1} parent=11 // pred_region
          _
        $region36: #{tpu_custom_call.1} parent=11 // pred_fallthru
          _
        // Predicated region
        $region37: #{tpu_custom_call.1} parent=11 // pred_check
          %p298 = pneg %p218
        $region38: #{tpu_custom_call.1} parent=11 // pred_check_branch
          %300 = sbr.rel (%p298) target = $region40
        $region39: #{tpu_custom_call.1} parent=11 // pred_region
          _
        $region40: #{tpu_custom_call.1} parent=11 // pred_fallthru
          _
        // Predicated region
        $region41: #{tpu_custom_call.1} parent=11 // pred_check
          %p301 = pneg %p239
        $region42: #{tpu_custom_call.1} parent=11 // pred_check_branch
          %303 = sbr.rel (%p301) target = $region44
        $region43: #{tpu_custom_call.1} parent=11 // pred_region
          _
        $region44: #{tpu_custom_call.1} parent=11 // pred_fallthru
          _
      $region12: #{tpu_custom_call.1} parent=5 // pred_fallthru
        _
      %p304 = scmp.lt.s32.totalorder %s19, 2
      // Predicated region
      $region45: #{tpu_custom_call.1} parent=5 // pred_check
        %p305 = pneg %p304
      $region46: #{tpu_custom_call.1} parent=5 // pred_check_branch
        %307 = sbr.rel (%p305) target = $region48
      $region47: #{tpu_custom_call.1} parent=5 // pred_region
        // Predicated region
        $region49: #{tpu_custom_call.1} parent=47 // pred_check
          %p308 = pneg %p39
        $region50: #{tpu_custom_call.1} parent=47 // pred_check_branch
          %310 = sbr.rel (%p308) target = $region52
        $region51: #{tpu_custom_call.1} parent=47 // pred_region
          %p311 = scmp.lt.s32.totalorder %s19, 1
          %s312 = scalar_select %p311, %s19, 1
          %s313 = smul.addr %s312, 8
          %s314 = smul.addr %s313, 8
          %s315 = scalar_lea.vmem %s0, %s314
        $region52: #{tpu_custom_call.1} parent=47 // pred_fallthru
          _
        // Predicated region
        $region53: #{tpu_custom_call.1} parent=47 // pred_check
          %p316 = pneg %p65
        $region54: #{tpu_custom_call.1} parent=47 // pred_check_branch
          %318 = sbr.rel (%p316) target = $region56
        $region55: #{tpu_custom_call.1} parent=47 // pred_region
          %p319 = scmp.lt.s32.totalorder %s19, 1
          %s320 = scalar_select %p319, %s19, 1
          %s321 = smul.addr %s320, 8
          %s322 = smul.addr %s321, 8
          %s323 = scalar_lea.vmem %s1, %s322
        $region56: #{tpu_custom_call.1} parent=47 // pred_fallthru
          _
      $region48: #{tpu_custom_call.1} parent=5 // pred_fallthru
        _
      %p324 = scmp.le.s32.totalorder 1, %s19
      %p325 = scmp.lt.s32.totalorder %s19, 3
      %p326 = pnand %p324, %p325
      %p327 = pneg %p326
      // Predicated region
      $region57: #{tpu_custom_call.1} parent=5 // pred_check
        _
      $region58: #{tpu_custom_call.1} parent=5 // pred_check_branch
        %329 = sbr.rel (%p326) target = $region60
      $region59: #{tpu_custom_call.1} parent=5 // pred_region
        %s330 = ssub.s32 %s19, 1
        %p331 = scmp.lt.s32.totalorder %s24, 1
        %s332 = scalar_select %p331, %s24, 1
        %s333 = smul.addr %s332, 8
        %s334 = smul.addr %s333, 8
        %s335 = scalar_lea.vmem %s0, %s334
        %p336 = pneg %p45
        %p337 = pneg %p42
        %p338 = scmp.lt.s32.totalorder %s24, 1
        %s339 = scalar_select %p338, %s24, 1
        %s340 = smul.addr %s339, 8
        %s341 = smul.addr %s340, 8
        %s342 = scalar_lea.vmem %s1, %s341
        %p343 = pneg %p71
        %p344 = pneg %p68
        %p345 = pneg %p92
        %p346 = pneg %p89
        %p347 = pneg %p113
        %p348 = pneg %p110
        %p349 = pneg %p134
        %p350 = pneg %p131
        %p351 = pneg %p155
        %p352 = pneg %p152
        %p353 = pneg %p176
        %p354 = pneg %p173
        %p355 = pneg %p197
        %p356 = pneg %p194
        %p357 = pneg %p218
        %p358 = pneg %p215
        %p359 = pneg %p239
        %p360 = pneg %p236
        %p361 = pneg %p265
        %p362 = pneg %p262
        %s363 = sand.u32 %s252, 1
        %s364 = scalar_lea.sflag [#allocation3], %s363
        %s365 = sand.u32 %s252, 1
        %s366 = smul.addr %s365, 64
        %s367 = scalar_lea.vmem [#allocation2], %s366
        %p368 = scmp.lt.s32.totalorder %s24, 1
        %s369 = scalar_select %p368, %s24, 1
        %s370 = smul.addr %s369, 8
        %s371 = smul.addr %s370, 8
        %s372 = scalar_lea.vmem %s0, %s371
        %p373 = scmp.lt.s32.totalorder %s24, 1
        %s374 = scalar_select %p373, %s24, 1
        %s375 = smul.addr %s374, 8
        %s376 = smul.addr %s375, 8
        %s377 = scalar_lea.vmem %s1, %s376
        %v378 = vld [vmem:[%s372] sm:$0xff]
        %v379 = vld [vmem:[%s372 + $0x8] sm:$0xff]
        %v380 = vld [vmem:[%s372 + $0x10] sm:$0xff]
        %v381 = vld [vmem:[%s372 + $0x18] sm:$0xff]
        %v382 = vld [vmem:[%s372 + $0x20] sm:$0xff]
        %v383 = vld [vmem:[%s372 + $0x28] sm:$0xff]
        %v384 = vld [vmem:[%s372 + $0x30] sm:$0xff]
        %v385 = vld [vmem:[%s372 + $0x38] sm:$0xff]
        %v386 = vld [vmem:[%s377] sm:$0xff]
        %v387 = vld [vmem:[%s377 + $0x8] sm:$0xff]
        %v388 = vld [vmem:[%s377 + $0x10] sm:$0xff]
        %v389 = vld [vmem:[%s377 + $0x18] sm:$0xff]
        %v390 = vld [vmem:[%s377 + $0x20] sm:$0xff]
        %v391 = vld [vmem:[%s377 + $0x28] sm:$0xff]
        %v392 = vld [vmem:[%s377 + $0x30] sm:$0xff]
        %v393 = vld [vmem:[%s377 + $0x38] sm:$0xff]
        %v394 = vadd.f32 %v378, %v386
        %v395 = vadd.f32 %v379, %v387
        %v396 = vadd.f32 %v380, %v388
        %v397 = vadd.f32 %v381, %v389
        %v398 = vadd.f32 %v382, %v390
        %v399 = vadd.f32 %v383, %v391
        %v400 = vadd.f32 %v384, %v392
        %v401 = vadd.f32 %v385, %v393
        %v402 = vadd.f32 %v394, %v395
        %v403 = vadd.f32 %v402, %v396
        %v404 = vadd.f32 %v403, %v397
        %v405 = vadd.f32 %v404, %v398
        %v406 = vadd.f32 %v405, %v399
        %v407 = vadd.f32 %v406, %v400
        %v408 = vadd.f32 %v407, %v401
        %v409 = vrot.slane %v408, 4
        %v410 = vadd.f32 %v408, %v409
        %v411 = vrot.slane %v410, 2
        %v412 = vadd.f32 %v410, %v411
        %v413 = vrot.slane %v412, 1
        %v414 = vadd.f32 %v412, %v413
        %v415 = vmul.f32 %v414, 0.00390625
        %v416 = vld [vmem:[%s6] sm:$0xff]
        %v417 = vld [vmem:[%s6 + $0x8] sm:$0xff]
        %v418 = vld [vmem:[%s6 + $0x10] sm:$0xff]
        %v419 = vld [vmem:[%s6 + $0x18] sm:$0xff]
        %v420 = vld [vmem:[%s6 + $0x20] sm:$0xff]
        %v421 = vld [vmem:[%s6 + $0x28] sm:$0xff]
        %v422 = vld [vmem:[%s6 + $0x30] sm:$0xff]
        %v423 = vld [vmem:[%s6 + $0x38] sm:$0xff]
        %v424 = vld [vmem:[%s6 + $0x40] sm:$0xff]
        %v425 = vld [vmem:[%s6 + $0x48] sm:$0xff]
        %v426 = vld [vmem:[%s6 + $0x50] sm:$0xff]
        %v427 = vld [vmem:[%s6 + $0x58] sm:$0xff]
        %v428 = vld [vmem:[%s6 + $0x60] sm:$0xff]
        %v429 = vld [vmem:[%s6 + $0x68] sm:$0xff]
        %v430 = vld [vmem:[%s6 + $0x70] sm:$0xff]
        %v431 = vld [vmem:[%s6 + $0x78] sm:$0xff]
        %v432 = vld [vmem:[%s7] sm:$0x1]
        %433 = vmatprep.subr.mxu0 0.0
        %434 = vmatpush1.msra.mxu0 %v416
        %435 = vmatprep.subr.mxu0 0.0
        %436 = vmatpush1.msra.mxu0 %v417
        %437 = vmatprep.subr.mxu0 0.0
        %438 = vmatpush1.msra.mxu0 %v418
        %439 = vmatprep.subr.mxu0 0.0
        %440 = vmatpush1.msra.mxu0 %v419
        %441 = vmatprep.subr.mxu0 0.0
        %442 = vmatpush1.msra.mxu0 %v420
        %443 = vmatprep.subr.mxu0 0.0
        %444 = vmatpush1.msra.mxu0 %v421
        %445 = vmatprep.subr.mxu0 0.0
        %446 = vmatpush1.msra.mxu0 %v422
        %447 = vmatprep.subr.mxu0 0.0
        %448 = vmatpush1.msra.mxu0 %v423
        %449 = vmatprep.subr.mxu0 0.0
        %450 = vmatpush1.msra.mxu0 %v424
        %451 = vmatprep.subr.mxu0 0.0
        %452 = vmatpush1.msra.mxu0 %v425
        %453 = vmatprep.subr.mxu0 0.0
        %454 = vmatpush1.msra.mxu0 %v426
        %455 = vmatprep.subr.mxu0 0.0
        %456 = vmatpush1.msra.mxu0 %v427
        %457 = vmatprep.subr.mxu0 0.0
        %458 = vmatpush1.msra.mxu0 %v428
        %459 = vmatprep.subr.mxu0 0.0
        %460 = vmatpush1.msra.mxu0 %v429
        %461 = vmatprep.subr.mxu0 0.0
        %462 = vmatpush1.msra.mxu0 %v430
        %463 = vmatprep.subr.mxu0 0.0
        %464 = vmatpush1.msra.mxu0 %v431
        %465 = vmatprep.subr.mxu0 0.0
        %466 = vmatpush1.msra.mxu0 0.0
        %467 = vmatprep.subr.mxu0 0.0
        %468 = vmatpush1.msra.mxu0 0.0
        %469 = vmatprep.subr.mxu0 0.0
        %470 = vmatpush1.msra.mxu0 0.0
        %471 = vmatprep.subr.mxu0 0.0
        %472 = vmatpush1.msra.mxu0 0.0
        %473 = vmatprep.subr.mxu0 0.0
        %474 = vmatpush1.msra.mxu0 0.0
        %475 = vmatprep.subr.mxu0 0.0
        %476 = vmatpush1.msra.mxu0 0.0
        %477 = vmatprep.subr.mxu0 0.0
        %478 = vmatpush1.msra.mxu0 0.0
        %479 = vmatprep.subr.mxu0 0.0
        %480 = vmatpush1.msra.mxu0 0.0
        %481 = vmatprep.subr.mxu0 0.0
        %482 = vmatpush1.msra.mxu0 0.0
        %483 = vmatprep.subr.mxu0 0.0
        %484 = vmatpush1.msra.mxu0 0.0
        %485 = vmatprep.subr.mxu0 0.0
        %486 = vmatpush1.msra.mxu0 0.0
        %487 = vmatprep.subr.mxu0 0.0
        %488 = vmatpush1.msra.mxu0 0.0
        %489 = vmatprep.subr.mxu0 0.0
        %490 = vmatpush1.msra.mxu0 0.0
        %491 = vmatprep.subr.mxu0 0.0
        %492 = vmatpush1.msra.mxu0 0.0
        %493 = vmatprep.subr.mxu0 0.0
        %494 = vmatpush1.msra.mxu0 0.0
        %495 = vmatprep.subr.mxu0 0.0
        %496 = vmatpush1.msra.mxu0 0.0
        %497 = vmatprep.mubr.f32.mxu0 0.0
        %498 = vmatmul.mubr.f32.gmra.mrb[0].mxu0 %v415
        %v499 = vpop.f32.mrb[0].mxu0
        %v500 = vadd.f32 %v432, %v499
        %v501 = vpop.f32.mrb[0].mxu0
        %502 = vdwg.mxu0
        %v503 = vmax.f32 %v500, 0.0
        %v504 = vld [vmem:[%s8] sm:$0xf]
        %v505 = vld [vmem:[%s9] sm:$0x1]
        %vm506 = vcmask 31744
        %v508 = vsel %vm506, %v503, 0
        %vm510 = vcmask 1043456
        %v512 = vsel %vm510, %v504, 0
        %514 = vmatprep.subr.mxu0 0.0
        %515 = vmatpush1.msra.mxu0 %v512
        %516 = vmatprep.subr.mxu0 0.0
        %517 = vmatpush1.msra.mxu0 0.0
        %518 = vmatprep.subr.mxu0 0.0
        %519 = vmatpush1.msra.mxu0 0.0
        %520 = vmatprep.subr.mxu0 0.0
        %521 = vmatpush1.msra.mxu0 0.0
        %522 = vmatprep.subr.mxu0 0.0
        %523 = vmatpush1.msra.mxu0 0.0
        %524 = vmatprep.subr.mxu0 0.0
        %525 = vmatpush1.msra.mxu0 0.0
        %526 = vmatprep.subr.mxu0 0.0
        %527 = vmatpush1.msra.mxu0 0.0
        %528 = vmatprep.subr.mxu0 0.0
        %529 = vmatpush1.msra.mxu0 0.0
        %530 = vmatprep.subr.mxu0 0.0
        %531 = vmatpush1.msra.mxu0 0.0
        %532 = vmatprep.subr.mxu0 0.0
        %533 = vmatpush1.msra.mxu0 0.0
        %534 = vmatprep.subr.mxu0 0.0
        %535 = vmatpush1.msra.mxu0 0.0
        %536 = vmatprep.subr.mxu0 0.0
        %537 = vmatpush1.msra.mxu0 0.0
        %538 = vmatprep.subr.mxu0 0.0
        %539 = vmatpush1.msra.mxu0 0.0
        %540 = vmatprep.subr.mxu0 0.0
        %541 = vmatpush1.msra.mxu0 0.0
        %542 = vmatprep.subr.mxu0 0.0
        %543 = vmatpush1.msra.mxu0 0.0
        %544 = vmatprep.subr.mxu0 0.0
        %545 = vmatpush1.msra.mxu0 0.0
        %546 = vmatprep.subr.mxu0 0.0
        %547 = vmatpush1.msra.mxu0 0.0
        %548 = vmatprep.subr.mxu0 0.0
        %549 = vmatpush1.msra.mxu0 0.0
        %550 = vmatprep.subr.mxu0 0.0
        %551 = vmatpush1.msra.mxu0 0.0
        %552 = vmatprep.subr.mxu0 0.0
        %553 = vmatpush1.msra.mxu0 0.0
        %554 = vmatprep.subr.mxu0 0.0
        %555 = vmatpush1.msra.mxu0 0.0
        %556 = vmatprep.subr.mxu0 0.0
        %557 = vmatpush1.msra.mxu0 0.0
        %558 = vmatprep.subr.mxu0 0.0
        %559 = vmatpush1.msra.mxu0 0.0
        %560 = vmatprep.subr.mxu0 0.0
        %561 = vmatpush1.msra.mxu0 0.0
        %562 = vmatprep.subr.mxu0 0.0
        %563 = vmatpush1.msra.mxu0 0.0
        %564 = vmatprep.subr.mxu0 0.0
        %565 = vmatpush1.msra.mxu0 0.0
        %566 = vmatprep.subr.mxu0 0.0
        %567 = vmatpush1.msra.mxu0 0.0
        %568 = vmatprep.subr.mxu0 0.0
        %569 = vmatpush1.msra.mxu0 0.0
        %570 = vmatprep.subr.mxu0 0.0
        %571 = vmatpush1.msra.mxu0 0.0
        %572 = vmatprep.subr.mxu0 0.0
        %573 = vmatpush1.msra.mxu0 0.0
        %574 = vmatprep.subr.mxu0 0.0
        %575 = vmatpush1.msra.mxu0 0.0
        %576 = vmatprep.subr.mxu0 0.0
        %577 = vmatpush1.msra.mxu0 0.0
        %578 = vmatprep.mubr.f32.mxu0 0.0
        %579 = vmatmul.mubr.f32.gmra.mrb[0].mxu0 %v508
        %v580 = vpop.f32.mrb[0].mxu0
        %v581 = vadd.f32 %v505, %v580
        %v582 = vpop.f32.mrb[0].mxu0
        %583 = vdwg.mxu0
        %v584 = vld [vmem:[%s2] sm:$0xff]
        %v585 = vld [vmem:[%s2 + $0x8] sm:$0xff]
        %v586 = vld [vmem:[%s2 + $0x10] sm:$0xff]
        %v587 = vld [vmem:[%s2 + $0x18] sm:$0xff]
        %v588 = vld [vmem:[%s2 + $0x20] sm:$0xff]
        %v589 = vld [vmem:[%s2 + $0x28] sm:$0xff]
        %v590 = vld [vmem:[%s2 + $0x30] sm:$0xff]
        %v591 = vld [vmem:[%s2 + $0x38] sm:$0xff]
        %v592 = vld [vmem:[%s2 + $0x40] sm:$0xff]
        %v593 = vld [vmem:[%s2 + $0x48] sm:$0xff]
        %v594 = vld [vmem:[%s2 + $0x50] sm:$0xff]
        %v595 = vld [vmem:[%s2 + $0x58] sm:$0xff]
        %v596 = vld [vmem:[%s2 + $0x60] sm:$0xff]
        %v597 = vld [vmem:[%s2 + $0x68] sm:$0xff]
        %v598 = vld [vmem:[%s2 + $0x70] sm:$0xff]
        %v599 = vld [vmem:[%s2 + $0x78] sm:$0xff]
        %v600 = vld [vmem:[%s3] sm:$0x1]
        %v602 = vlaneseq
        %v603 = vshrl.u32 %v602, 7
        %v604 = vsub.s32 0, %v603
        %v605 = vrot.slane %v600, %v604
        %607 = vmatprep.subr.mxu0 0.0
        %608 = vmatpush1.msra.mxu0 %v584
        %609 = vmatprep.subr.mxu0 0.0
        %610 = vmatpush1.msra.mxu0 %v585
        %611 = vmatprep.subr.mxu0 0.0
        %612 = vmatpush1.msra.mxu0 %v586
        %613 = vmatprep.subr.mxu0 0.0
        %614 = vmatpush1.msra.mxu0 %v587
        %615 = vmatprep.subr.mxu0 0.0
        %616 = vmatpush1.msra.mxu0 %v588
        %617 = vmatprep.subr.mxu0 0.0
        %618 = vmatpush1.msra.mxu0 %v589
        %619 = vmatprep.subr.mxu0 0.0
        %620 = vmatpush1.msra.mxu0 %v590
        %621 = vmatprep.subr.mxu0 0.0
        %622 = vmatpush1.msra.mxu0 %v591
        %623 = vmatprep.subr.mxu0 0.0
        %624 = vmatpush1.msra.mxu0 %v592
        %625 = vmatprep.subr.mxu0 0.0
        %626 = vmatpush1.msra.mxu0 %v593
        %627 = vmatprep.subr.mxu0 0.0
        %628 = vmatpush1.msra.mxu0 %v594
        %629 = vmatprep.subr.mxu0 0.0
        %630 = vmatpush1.msra.mxu0 %v595
        %631 = vmatprep.subr.mxu0 0.0
        %632 = vmatpush1.msra.mxu0 %v596
        %633 = vmatprep.subr.mxu0 0.0
        %634 = vmatpush1.msra.mxu0 %v597
        %635 = vmatprep.subr.mxu0 0.0
        %636 = vmatpush1.msra.mxu0 %v598
        %637 = vmatprep.subr.mxu0 0.0
        %638 = vmatpush1.msra.mxu0 %v599
        %639 = vmatprep.subr.mxu0 0.0
        %640 = vmatpush1.msra.mxu0 0.0
        %641 = vmatprep.subr.mxu0 0.0
        %642 = vmatpush1.msra.mxu0 0.0
        %643 = vmatprep.subr.mxu0 0.0
        %644 = vmatpush1.msra.mxu0 0.0
        %645 = vmatprep.subr.mxu0 0.0
        %646 = vmatpush1.msra.mxu0 0.0
        %647 = vmatprep.subr.mxu0 0.0
        %648 = vmatpush1.msra.mxu0 0.0
        %649 = vmatprep.subr.mxu0 0.0
        %650 = vmatpush1.msra.mxu0 0.0
        %651 = vmatprep.subr.mxu0 0.0
        %652 = vmatpush1.msra.mxu0 0.0
        %653 = vmatprep.subr.mxu0 0.0
        %654 = vmatpush1.msra.mxu0 0.0
        %655 = vmatprep.subr.mxu0 0.0
        %656 = vmatpush1.msra.mxu0 0.0
        %657 = vmatprep.subr.mxu0 0.0
        %658 = vmatpush1.msra.mxu0 0.0
        %659 = vmatprep.subr.mxu0 0.0
        %660 = vmatpush1.msra.mxu0 0.0
        %661 = vmatprep.subr.mxu0 0.0
        %662 = vmatpush1.msra.mxu0 0.0
        %663 = vmatprep.subr.mxu0 0.0
        %664 = vmatpush1.msra.mxu0 0.0
        %665 = vmatprep.subr.mxu0 0.0
        %666 = vmatpush1.msra.mxu0 0.0
        %667 = vmatprep.subr.mxu0 0.0
        %668 = vmatpush1.msra.mxu0 0.0
        %669 = vmatprep.subr.mxu0 0.0
        %670 = vmatpush1.msra.mxu0 0.0
        %671 = vmatprep.mubr.f32.mxu0 0.0
        %672 = vmatmul.mubr.f32.gmra.mrb[0].mxu0 %v394
        %v673 = vpop.f32.mrb[0].mxu0
        %v674 = vadd.f32 %v605, %v673
        %v675 = vpop.f32.mrb[0].mxu0
        %676 = vmatprep.mubr.f32.mxu0 0.0
        %677 = vmatmul.mubr.f32.gmra.mrb[0].mxu0 %v395
        %v678 = vpop.f32.mrb[0].mxu0
        %v679 = vadd.f32 %v605, %v678
        %v680 = vpop.f32.mrb[0].mxu0
        %681 = vmatprep.mubr.f32.mxu0 0.0
        %682 = vmatmul.mubr.f32.gmra.mrb[0].mxu0 %v396
        %v683 = vpop.f32.mrb[0].mxu0
        %v684 = vadd.f32 %v605, %v683
        %v685 = vpop.f32.mrb[0].mxu0
        %686 = vmatprep.mubr.f32.mxu0 0.0
        %687 = vmatmul.mubr.f32.gmra.mrb[0].mxu0 %v397
        %v688 = vpop.f32.mrb[0].mxu0
        %v689 = vadd.f32 %v605, %v688
        %v690 = vpop.f32.mrb[0].mxu0
        %691 = vmatprep.mubr.f32.mxu0 0.0
        %692 = vmatmul.mubr.f32.gmra.mrb[0].mxu0 %v398
        %v693 = vpop.f32.mrb[0].mxu0
        %v694 = vadd.f32 %v605, %v693
        %v695 = vpop.f32.mrb[0].mxu0
        %696 = vmatprep.mubr.f32.mxu0 0.0
        %697 = vmatmul.mubr.f32.gmra.mrb[0].mxu0 %v399
        %v698 = vpop.f32.mrb[0].mxu0
        %v699 = vadd.f32 %v605, %v698
        %v700 = vpop.f32.mrb[0].mxu0
        %701 = vmatprep.mubr.f32.mxu0 0.0
        %702 = vmatmul.mubr.f32.gmra.mrb[0].mxu0 %v400
        %v703 = vpop.f32.mrb[0].mxu0
        %v704 = vadd.f32 %v605, %v703
        %v705 = vpop.f32.mrb[0].mxu0
        %706 = vmatprep.mubr.f32.mxu0 0.0
        %707 = vmatmul.mubr.f32.gmra.mrb[0].mxu0 %v401
        %v708 = vpop.f32.mrb[0].mxu0
        %v709 = vadd.f32 %v605, %v708
        %v710 = vpop.f32.mrb[0].mxu0
        %711 = vdwg.mxu0
        %v712 = vmax.f32 %v674, 0.0
        %v713 = vmax.f32 %v679, 0.0
        %v714 = vmax.f32 %v684, 0.0
        %v715 = vmax.f32 %v689, 0.0
        %v716 = vmax.f32 %v694, 0.0
        %v717 = vmax.f32 %v699, 0.0
        %v718 = vmax.f32 %v704, 0.0
        %v719 = vmax.f32 %v709, 0.0
        %v720 = vld [vmem:[%s4] sm:$0xff]
        %v721 = vld [vmem:[%s4 + $0x8] sm:$0xff]
        %v722 = vld [vmem:[%s5] sm:$0x1]
        %v724 = vlaneseq
        %v725 = vshrl.u32 %v724, 7
        %v726 = vsub.s32 0, %v725
        %v727 = vrot.slane %v722, %v726
        %vm729 = vcmask 130048
        %v731 = vsel %vm729, %v712, 0
        %v734 = vsel %vm729, %v713, 0
        %v737 = vsel %vm729, %v714, 0
        %v740 = vsel %vm729, %v715, 0
        %v743 = vsel %vm729, %v716, 0
        %v746 = vsel %vm729, %v717, 0
        %v749 = vsel %vm729, %v718, 0
        %v752 = vsel %vm729, %v719, 0
        %754 = vmatprep.subr.mxu0 0.0
        %755 = vmatpush1.msra.mxu0 %v720
        %756 = vmatprep.subr.mxu0 0.0
        %757 = vmatpush1.msra.mxu0 %v721
        %758 = vmatprep.subr.mxu0 0.0
        %759 = vmatpush1.msra.mxu0 0.0
        %760 = vmatprep.subr.mxu0 0.0
        %761 = vmatpush1.msra.mxu0 0.0
        %762 = vmatprep.subr.mxu0 0.0
        %763 = vmatpush1.msra.mxu0 0.0
        %764 = vmatprep.subr.mxu0 0.0
        %765 = vmatpush1.msra.mxu0 0.0
        %766 = vmatprep.subr.mxu0 0.0
        %767 = vmatpush1.msra.mxu0 0.0
        %768 = vmatprep.subr.mxu0 0.0
        %769 = vmatpush1.msra.mxu0 0.0
        %770 = vmatprep.subr.mxu0 0.0
        %771 = vmatpush1.msra.mxu0 0.0
        %772 = vmatprep.subr.mxu0 0.0
        %773 = vmatpush1.msra.mxu0 0.0
        %774 = vmatprep.subr.mxu0 0.0
        %775 = vmatpush1.msra.mxu0 0.0
        %776 = vmatprep.subr.mxu0 0.0
        %777 = vmatpush1.msra.mxu0 0.0
        %778 = vmatprep.subr.mxu0 0.0
        %779 = vmatpush1.msra.mxu0 0.0
        %780 = vmatprep.subr.mxu0 0.0
        %781 = vmatpush1.msra.mxu0 0.0
        %782 = vmatprep.subr.mxu0 0.0
        %783 = vmatpush1.msra.mxu0 0.0
        %784 = vmatprep.subr.mxu0 0.0
        %785 = vmatpush1.msra.mxu0 0.0
        %786 = vmatprep.subr.mxu0 0.0
        %787 = vmatpush1.msra.mxu0 0.0
        %788 = vmatprep.subr.mxu0 0.0
        %789 = vmatpush1.msra.mxu0 0.0
        %790 = vmatprep.subr.mxu0 0.0
        %791 = vmatpush1.msra.mxu0 0.0
        %792 = vmatprep.subr.mxu0 0.0
        %793 = vmatpush1.msra.mxu0 0.0
        %794 = vmatprep.subr.mxu0 0.0
        %795 = vmatpush1.msra.mxu0 0.0
        %796 = vmatprep.subr.mxu0 0.0
        %797 = vmatpush1.msra.mxu0 0.0
        %798 = vmatprep.subr.mxu0 0.0
        %799 = vmatpush1.msra.mxu0 0.0
        %800 = vmatprep.subr.mxu0 0.0
        %801 = vmatpush1.msra.mxu0 0.0
        %802 = vmatprep.subr.mxu0 0.0
        %803 = vmatpush1.msra.mxu0 0.0
        %804 = vmatprep.subr.mxu0 0.0
        %805 = vmatpush1.msra.mxu0 0.0
        %806 = vmatprep.subr.mxu0 0.0
        %807 = vmatpush1.msra.mxu0 0.0
        %808 = vmatprep.subr.mxu0 0.0
        %809 = vmatpush1.msra.mxu0 0.0
        %810 = vmatprep.subr.mxu0 0.0
        %811 = vmatpush1.msra.mxu0 0.0
        %812 = vmatprep.subr.mxu0 0.0
        %813 = vmatpush1.msra.mxu0 0.0
        %814 = vmatprep.subr.mxu0 0.0
        %815 = vmatpush1.msra.mxu0 0.0
        %816 = vmatprep.subr.mxu0 0.0
        %817 = vmatpush1.msra.mxu0 0.0
        %818 = vmatprep.mubr.f32.mxu0 0.0
        %819 = vmatmul.mubr.f32.gmra.mrb[0].mxu0 %v731
        %v820 = vpop.f32.mrb[0].mxu0
        %v821 = vadd.f32 %v727, %v820
        %v822 = vpop.f32.mrb[0].mxu0
        %823 = vmatprep.mubr.f32.mxu0 0.0
        %824 = vmatmul.mubr.f32.gmra.mrb[0].mxu0 %v734
        %v825 = vpop.f32.mrb[0].mxu0
        %v826 = vadd.f32 %v727, %v825
        %v827 = vpop.f32.mrb[0].mxu0
        %828 = vmatprep.mubr.f32.mxu0 0.0
        %829 = vmatmul.mubr.f32.gmra.mrb[0].mxu0 %v737
        %v830 = vpop.f32.mrb[0].mxu0
        %v831 = vadd.f32 %v727, %v830
        %v832 = vpop.f32.mrb[0].mxu0
        %833 = vmatprep.mubr.f32.mxu0 0.0
        %834 = vmatmul.mubr.f32.gmra.mrb[0].mxu0 %v740
        %v835 = vpop.f32.mrb[0].mxu0
        %v836 = vadd.f32 %v727, %v835
        %v837 = vpop.f32.mrb[0].mxu0
        %838 = vmatprep.mubr.f32.mxu0 0.0
        %839 = vmatmul.mubr.f32.gmra.mrb[0].mxu0 %v743
        %v840 = vpop.f32.mrb[0].mxu0
        %v841 = vadd.f32 %v727, %v840
        %v842 = vpop.f32.mrb[0].mxu0
        %843 = vmatprep.mubr.f32.mxu0 0.0
        %844 = vmatmul.mubr.f32.gmra.mrb[0].mxu0 %v746
        %v845 = vpop.f32.mrb[0].mxu0
        %v846 = vadd.f32 %v727, %v845
        %v847 = vpop.f32.mrb[0].mxu0
        %848 = vmatprep.mubr.f32.mxu0 0.0
        %849 = vmatmul.mubr.f32.gmra.mrb[0].mxu0 %v749
        %v850 = vpop.f32.mrb[0].mxu0
        %v851 = vadd.f32 %v727, %v850
        %v852 = vpop.f32.mrb[0].mxu0
        %853 = vmatprep.mubr.f32.mxu0 0.0
        %854 = vmatmul.mubr.f32.gmra.mrb[0].mxu0 %v752
        %v855 = vpop.f32.mrb[0].mxu0
        %v856 = vadd.f32 %v727, %v855
        %v857 = vpop.f32.mrb[0].mxu0
        %858 = vdwg.mxu0
        %v859 = vlaneseq
        %v860 = vshrl.u32 %v859, 7
        %v861 = vsub.s32 0, %v860
        %v862 = vrot.slane %v581, %v861
        %v863 = vadd.f32 %v821, %v862
        %v864 = vadd.f32 %v826, %v862
        %v865 = vadd.f32 %v831, %v862
        %v866 = vadd.f32 %v836, %v862
        %v867 = vadd.f32 %v841, %v862
        %v868 = vadd.f32 %v846, %v862
        %v869 = vadd.f32 %v851, %v862
        %v870 = vadd.f32 %v856, %v862
        %v871 = vxor.u32 %v863, 2147483648
        %v872 = vxor.u32 %v864, 2147483648
        %v873 = vxor.u32 %v865, 2147483648
        %v874 = vxor.u32 %v866, 2147483648
        %v875 = vxor.u32 %v867, 2147483648
        %v876 = vxor.u32 %v868, 2147483648
        %v877 = vxor.u32 %v869, 2147483648
        %v878 = vxor.u32 %v870, 2147483648
        %v879 = vmul.f32 %v871, 1.442695
        %v880 = vpow.pop %v879
        %v881 = vmul.f32 %v872, 1.442695
        %v882 = vpow.pop %v881
        %v883 = vmul.f32 %v873, 1.442695
        %v884 = vpow.pop %v883
        %v885 = vmul.f32 %v874, 1.442695
        %v886 = vpow.pop %v885
        %v887 = vmul.f32 %v875, 1.442695
        %v888 = vpow.pop %v887
        %v889 = vmul.f32 %v876, 1.442695
        %v890 = vpow.pop %v889
        %v891 = vmul.f32 %v877, 1.442695
        %v892 = vpow.pop %v891
        %v893 = vmul.f32 %v878, 1.442695
        %v894 = vpow.pop %v893
        %v895 = vadd.f32 %v880, 1.0
        %v896 = vadd.f32 %v882, 1.0
        %v897 = vadd.f32 %v884, 1.0
        %v898 = vadd.f32 %v886, 1.0
        %v899 = vadd.f32 %v888, 1.0
        %v900 = vadd.f32 %v890, 1.0
        %v901 = vadd.f32 %v892, 1.0
        %v902 = vadd.f32 %v894, 1.0
        %v903 = vrcp.pop %v895
        %v904 = vmul.f32 1.0, %v903
        %v905 = vrcp.pop %v896
        %v906 = vmul.f32 1.0, %v905
        %v907 = vrcp.pop %v897
        %v908 = vmul.f32 1.0, %v907
        %v909 = vrcp.pop %v898
        %v910 = vmul.f32 1.0, %v909
        %v911 = vrcp.pop %v899
        %v912 = vmul.f32 1.0, %v911
        %v913 = vrcp.pop %v900
        %v914 = vmul.f32 1.0, %v913
        %v915 = vrcp.pop %v901
        %v916 = vmul.f32 1.0, %v915
        %v917 = vrcp.pop %v902
        %v918 = vmul.f32 1.0, %v917
        %v919 = vsub.f32 %v378, %v386
        %v920 = vsub.f32 %v379, %v387
        %v921 = vsub.f32 %v380, %v388
        %v922 = vsub.f32 %v381, %v389
        %v923 = vsub.f32 %v382, %v390
        %v924 = vsub.f32 %v383, %v391
        %v925 = vsub.f32 %v384, %v392
        %v926 = vsub.f32 %v385, %v393
        %v927 = vmul.f32 %v919, %v904
        %v928 = vmul.f32 %v920, %v906
        %v929 = vmul.f32 %v921, %v908
        %v930 = vmul.f32 %v922, %v910
        %v931 = vmul.f32 %v923, %v912
        %v932 = vmul.f32 %v924, %v914
        %v933 = vmul.f32 %v925, %v916
        %v934 = vmul.f32 %v926, %v918
        %v935 = vadd.f32 %v386, %v927
        %v936 = vadd.f32 %v387, %v928
        %v937 = vadd.f32 %v388, %v929
        %v938 = vadd.f32 %v389, %v930
        %v939 = vadd.f32 %v390, %v931
        %v940 = vadd.f32 %v391, %v932
        %v941 = vadd.f32 %v392, %v933
        %v942 = vadd.f32 %v393, %v934
        %v943 = vmul.f32 %v935, 2.0
        %v944 = vmul.f32 %v936, 2.0
        %v945 = vmul.f32 %v937, 2.0
        %v946 = vmul.f32 %v938, 2.0
        %v947 = vmul.f32 %v939, 2.0
        %v948 = vmul.f32 %v940, 2.0
        %v949 = vmul.f32 %v941, 2.0
        %v950 = vmul.f32 %v942, 2.0
        %951 = vst [vmem:[%s367] sm:$0xff] %v943
        %952 = vst [vmem:[%s367 + $0x8] sm:$0xff] %v944
        %953 = vst [vmem:[%s367 + $0x10] sm:$0xff] %v945
        %954 = vst [vmem:[%s367 + $0x18] sm:$0xff] %v946
        %955 = vst [vmem:[%s367 + $0x20] sm:$0xff] %v947
        %956 = vst [vmem:[%s367 + $0x28] sm:$0xff] %v948
        %957 = vst [vmem:[%s367 + $0x30] sm:$0xff] %v949
        %958 = vst [vmem:[%s367 + $0x38] sm:$0xff] %v950
        %s959 = sand.u32 %s252, 1
        %s960 = scalar_lea.sflag [#allocation3], %s959
        %s961 = sand.u32 %s252, 1
        %s962 = smul.addr %s961, 64
        %s963 = scalar_lea.vmem [#allocation2], %s962
        // Predicated region
        $region61: #{tpu_custom_call.1} parent=59 // pred_check
          %p964 = pneg %p262
        $region62: #{tpu_custom_call.1} parent=59 // pred_check_branch
          %966 = sbr.rel (%p964) target = $region64
        $region63: #{tpu_custom_call.1} parent=59 // pred_region
          %s968 = ssub.s32 1024, 1024
          %969 = vsyncadd %s960, %s968
          %s970 = smul.addr %s24, 8
          %s971 = smul.addr %s970, 128
          %s972 = scalar_lea.hbm %s10, %s971
          %s973 = sshll.u32 %s963, 4
          %s974 = int_to_ptr.vmem [resolvable:$true] %s973
          %979 = dma.vmem_to_hbm [thread:$0]  %s974, 1024, %s972, %s960, 128, 128, 8
        $region64: #{tpu_custom_call.1} parent=59 // pred_fallthru
          _
      $region60: #{tpu_custom_call.1} parent=5 // pred_fallthru
        _
      %p980 = scmp.le.s32.totalorder 2, %s19
      // Predicated region
      $region65: #{tpu_custom_call.1} parent=5 // pred_check
        %p981 = pneg %p980
      $region66: #{tpu_custom_call.1} parent=5 // pred_check_branch
        %983 = sbr.rel (%p981) target = $region68
      $region67: #{tpu_custom_call.1} parent=5 // pred_region
        %s984 = ssub.s32 %s19, 2
        // Predicated region
        $region69: #{tpu_custom_call.1} parent=67 // pred_check
          %p985 = pneg %p268
        $region70: #{tpu_custom_call.1} parent=67 // pred_check_branch
          %987 = sbr.rel (%p985) target = $region72
        $region71: #{tpu_custom_call.1} parent=67 // pred_region
          %s988 = sand.u32 %s253, 1
          %s989 = scalar_lea.sflag [#allocation3], %s988
          %s990 = sand.u32 %s253, 1
          %s991 = smul.addr %s990, 64
          %s992 = scalar_lea.vmem [#allocation2], %s991
          %993 = dma.done %s989, 1024
        $region72: #{tpu_custom_call.1} parent=67 // pred_fallthru
          _
      $region68: #{tpu_custom_call.1} parent=5 // pred_fallthru
        _
    $region6: #{tpu_custom_call.1} parent=1 // loop_footer
      %s23 = sadd.s32 1, %s19
    $region7: #{tpu_custom_call.1} parent=1 // loop_footer_branch
      %18 = sbr.rel target = $region3
    $region8: #{tpu_custom_call.1} parent=1 // loop_exit
      _
    %994 = vsyncpa [#allocation3], 1
    %s995 = scalar_lea.sflag [#allocation3], 1
    %996 = vsyncpa %s995, 1

</llo_original>
